<compile_context>
chip_gen: v5e
topology: v5e:2x2
jax: 0.10.0
libtpu: 0.0.40
codegen_flags: <defaults>
</compile_context>

<pallas_src>
import jax
import jax.numpy as jnp
from jax import lax
from jax.experimental import pallas as pl
from jax.experimental.pallas import tpu as pltpu

C_MID = 20   # out-channels of (repaired) first conv / in-channels of second
C_OUT = 4    # out-channels of second conv (as declared: Conv2d(20, 4, 1x1))

_HI = lax.Precision.HIGHEST


def _model_kernel(x_ref, p_ref, out_ref):
    """Entire (repaired) forward in one kernel.

    x_ref  : (C, W)      VMEM -- x.reshape(C, H*W)  (H == 1)
    p_ref  : (C+6, 20)   VMEM -- packed params: rows [0,C)=w1.T, C=b1,
                                 [C+1,C+5)=w2, C+5=b2
    out_ref: (1, C_OUT)  VMEM -- relu(max_j(w_eff . x[:, j]) + b_eff), lane-dense
    """
    C = x_ref.shape[0]

    w1t = p_ref[0:C, :]                                    # (C, 20) = w1.T
    b1 = p_ref[C:C + 1, :]                                 # (1, 20)
    w2_0 = p_ref[C + 1:C + 2, :]                           # (1, 20) = w2[0, :]
    b2_0 = p_ref[C + 1 + C_OUT:C + 2 + C_OUT, 0:1]         # (1, 1)  = b2[0]

    # Exact algebraic fold of the two 1x1 convs restricted to the consumed
    # slice (channel 0, first C flat positions): VPU mul + XLU lane reduce.
    w_eff = jnp.sum(w1t * w2_0, axis=-1, keepdims=True)          # (C, 1)
    b_eff = jnp.sum(b1 * w2_0, axis=-1, keepdims=True) + b2_0    # (1, 1)

    xc = x_ref[:, 0:C]                                           # (C, C)
    v = jnp.sum(xc * w_eff, axis=0, keepdims=True)               # (1, C) sublane reduce
    m = jnp.max(v, axis=-1, keepdims=True)                       # (1, 1) lane max

    # ReLU is monotone: max_j relu(v_j + b) == relu(max_j v_j + b);
    # torch's .min(dim=-1)[0] and the trailing second relu are dead code.
    out = jnp.maximum(m + b_eff, 0.0)                            # (1, 1)
    out_ref[...] = jnp.broadcast_to(out, out_ref.shape).astype(out_ref.dtype)


def init_params(key, cin):
    k1, k2, k3, k4 = jax.random.split(key, 4)
    w1 = jax.random.normal(k1, (C_MID, cin), jnp.float32) * (1.0 / jnp.sqrt(cin))
    b1 = jax.random.normal(k2, (C_MID,), jnp.float32) * 0.1
    w2 = jax.random.normal(k3, (C_OUT, C_MID), jnp.float32) * (1.0 / jnp.sqrt(C_MID))
    b2 = jax.random.normal(k4, (C_OUT,), jnp.float32) * 0.1
    return w1, b1, w2, b2


def pack_params(w1, b1, w2, b2):
    """One-time (init-time) packing of all conv params into a single operand.

    Layout (rows x 20 cols): [0, C) = w1.T, C = b1, [C+1, C+5) = w2, C+5 = b2.
    Storing w1 transposed makes every in-kernel contraction a lane/sublane
    reduce with no transpose anywhere on the per-call path.
    """
    cin = w1.shape[1]
    p = jnp.zeros((cin + 2 + C_OUT, C_MID), jnp.float32)
    p = p.at[0:cin, :].set(w1.T)
    p = p.at[cin, :].set(b1)
    p = p.at[cin + 1:cin + 1 + C_OUT, :].set(w2)
    p = p.at[cin + 1 + C_OUT, 0:C_OUT].set(b2)
    return p


def model_forward(x, packed_params):
    B, C, H, W = x.shape
    assert B == 1 and H == 1, "shapes implied by the torch view/slice chain"
    assert C_OUT * H * W == C_MID * C, "needed for the (B, 20, 1, C) view"
    assert C <= W, "first-C flat elements must lie inside channel 0"
    assert packed_params.shape == (C + 2 + C_OUT, C_MID)

    # Contiguous reshape: pure metadata (bitcast), no extra HLO materialization.
    xr = x.reshape(C, H * W)

    out = pl.pallas_call(
        _model_kernel,
        out_shape=jax.ShapeDtypeStruct((1, C_OUT), x.dtype),
        in_specs=[
            pl.BlockSpec(memory_space=pltpu.MemorySpace.VMEM),   # xr
            pl.BlockSpec(memory_space=pltpu.MemorySpace.VMEM),   # packed params
        ],
        out_specs=pl.BlockSpec(memory_space=pltpu.MemorySpace.VMEM),
        cost_estimate=pl.CostEstimate(
            flops=2 * C * C_MID + 2 * C_MID + 2 * C * C + C + 2,
            transcendentals=0,
            bytes_accessed=4 * (C * W + (C + 2 + C_OUT) * C_MID + C_OUT),
        ),
        compiler_params=pltpu.CompilerParams(vmem_limit_bytes=1 << 20),
    )(xr, packed_params)

    # TODO(synk): torch's final `.view((B, 4, s1, s2))` is numel-invalid for any
    # non-empty tensor; repaired (as before) as the scalar broadcast to 4
    # channels -- the kernel already wrote the 4 lanes, so only a free reshape
    # remains here.
    return out.reshape(B, C_OUT, 1)


if __name__ == "__main__":
    key = jax.random.PRNGKey(0)
    kx, kp = jax.random.split(key)

    # Shapes implied by the (repaired) forward:
    #   B = 1, H = 1 (required by the y1 view / slice starts),
    #   4 * H * W == 20 * C  =>  C = 4, W = 20.
    B, C, H, W = 1, 4, 1, 20
    x = jax.random.normal(kx, (B, C, H, W), jnp.float32)
    w1, b1, w2, b2 = init_params(kp, C)
    packed = jax.block_until_ready(pack_params(w1, b1, w2, b2))  # one-time, off the hot path

    out = jax.block_until_ready(model_forward(x, packed))

    # Pure-JAX reference of the unfolded pipeline (full convs, then select).
    xf = x.reshape(C, H * W)
    y = jnp.dot(w2, jnp.dot(w1, xf, precision=_HI) + b1[:, None],
                precision=_HI) + b2[:, None]
    m = jnp.maximum(jnp.max(jnp.maximum(y[0, :C], 0.0)), 0.0)
    ref = jnp.full((B, C_OUT, 1), m, jnp.float32)

    assert out.shape == (B, C_OUT, 1), out.shape
    assert jnp.allclose(out, ref, atol=1e-5, rtol=1e-5), (out, ref)
    print("KERNEL_OK")
</pallas_src>

<mosaic_0001>
module attributes {stable_mosaic.version = 11 : i64} {
  func.func @_model_kernel(%arg0: memref<4x20xf32, #tpu.memory_space<vmem>>, %arg1: memref<10x20xf32, #tpu.memory_space<vmem>>, %arg2: memref<1x4xf32, #tpu.memory_space<vmem>>) attributes {dimension_semantics = [], scalar_prefetch = 0 : i64, scratch_operands = 0 : i64, tpu.core_type = #tpu.core_type<tc>} {
    %c0 = arith.constant 0 : index
    %c0_0 = arith.constant 0 : index
    %0 = vector.load %arg1[%c0, %c0_0] : memref<10x20xf32, #tpu.memory_space<vmem>>, vector<4x20xf32>
    %c4 = arith.constant 4 : index
    %c0_1 = arith.constant 0 : index
    %1 = vector.load %arg1[%c4, %c0_1] : memref<10x20xf32, #tpu.memory_space<vmem>>, vector<1x20xf32>
    %c5 = arith.constant 5 : index
    %c0_2 = arith.constant 0 : index
    %2 = vector.load %arg1[%c5, %c0_2] : memref<10x20xf32, #tpu.memory_space<vmem>>, vector<1x20xf32>
    %c9 = arith.constant 9 : index
    %c0_3 = arith.constant 0 : index
    %3 = vector.load %arg1[%c9, %c0_3] : memref<10x20xf32, #tpu.memory_space<vmem>>, vector<1x1xf32>
    %4 = vector.broadcast %2 : vector<1x20xf32> to vector<4x20xf32>
    %5 = arith.mulf %0, %4 : vector<4x20xf32>
    %cst = arith.constant dense<0.000000e+00> : vector<4xf32>
    %6 = vector.multi_reduction <add>, %5, %cst [1] : vector<4x20xf32> to vector<4xf32>
    %7 = vector.shape_cast %6 : vector<4xf32> to vector<4x1xf32>
    %8 = arith.mulf %1, %2 : vector<1x20xf32>
    %cst_4 = arith.constant dense<0.000000e+00> : vector<1xf32>
    %9 = vector.multi_reduction <add>, %8, %cst_4 [1] : vector<1x20xf32> to vector<1xf32>
    %10 = vector.shape_cast %9 : vector<1xf32> to vector<1x1xf32>
    %11 = arith.addf %10, %3 : vector<1x1xf32>
    %c0_5 = arith.constant 0 : index
    %c0_6 = arith.constant 0 : index
    %12 = vector.load %arg0[%c0_5, %c0_6] : memref<4x20xf32, #tpu.memory_space<vmem>>, vector<4x4xf32>
    %13 = vector.broadcast %7 : vector<4x1xf32> to vector<4x4xf32>
    %14 = arith.mulf %12, %13 : vector<4x4xf32>
    %cst_7 = arith.constant dense<0.000000e+00> : vector<4xf32>
    %15 = vector.multi_reduction <add>, %14, %cst_7 [0] : vector<4x4xf32> to vector<4xf32>
    %16 = vector.shape_cast %15 : vector<4xf32> to vector<1x4xf32>
    %cst_8 = arith.constant dense<0xFF800000> : vector<1xf32>
    %17 = vector.multi_reduction <maximumf>, %16, %cst_8 [1] : vector<1x4xf32> to vector<1xf32>
    %18 = vector.shape_cast %17 : vector<1xf32> to vector<1x1xf32>
    %19 = arith.addf %18, %11 : vector<1x1xf32>
    %cst_9 = arith.constant 0.000000e+00 : f32
    %20 = vector.broadcast %cst_9 : f32 to vector<1x1xf32>
    %21 = arith.maximumf %19, %20 : vector<1x1xf32>
    %22 = vector.shape_cast %21 : vector<1x1xf32> to vector<1x1xf32>
    %23 = vector.broadcast %22 : vector<1x1xf32> to vector<1x4xf32>
    %c0_10 = arith.constant 0 : index
    %c0_11 = arith.constant 0 : index
    %24 = vector.load %arg2[%c0_10, %c0_11] : memref<1x4xf32, #tpu.memory_space<vmem>>, vector<1x4xf32>
    tpu.vector_store %arg2[%c0_10, %c0_11], %23 {strides = array<i32>} : memref<1x4xf32, #tpu.memory_space<vmem>>, vector<1x4xf32>,
    return
  }
}

</mosaic_0001>

<llo_original>
// kernel: tpu_custom_call.1
$region0: #{tpu_custom_call.1}
  #allocation0 [shape = 'u32[]', space=smem, size = 0x4, offset = 0x4, fixed_abs, tag = 'smem constant byte address 0x4 - core index']
  #allocation1 [shape = 'u32[72,128]{1,0:T(1,128)}', space=vmem, size = 0x9000, scoped, tag = 'internal scratch']
  %s0 = inlined_call_operand.hbm [shape: f32[4,20], index: 0, kind: input, shape index: {}]
  %s1 = inlined_call_operand.hbm [shape: f32[10,20], index: 1, kind: input, shape index: {}]
  %s2 = inlined_call_operand.hbm [shape: f32[1,4], index: 2, kind: output, shape index: {}]
  %s3 = sld [smem:[#allocation0]]
  $region26: #{tpu_custom_call.1} parent=0
    _
  %s5 = ssub.s32 1, %s3
  %s6 = scalar_select 0, %s5, %s3
  $region1: #{tpu_custom_call.1} parent=0
    #allocation2 [shape = 'u8[2048]{0}', space=vmem, size = 0x800, scoped, tag = 'input window, operand 0, single buffered']
    #allocation3 [shape = 's32[1]{0}', space=sflag, size = 0x4, scoped, tag = 'scoped memory for tpu_custom_call.1']
    #allocation4 [shape = 's32[1]{0}', space=sflag, size = 0x4, scoped, tag = 'scoped memory for tpu_custom_call.1']
    #allocation5 [shape = 'u8[8192]{0}', space=vmem, size = 0x2000, scoped, tag = 'input window, operand 1, single buffered']
    #allocation6 [shape = 's32[1]{0}', space=sflag, size = 0x4, scoped, tag = 'scoped memory for tpu_custom_call.1']
    #allocation7 [shape = 'u8[512]{0}', space=vmem, size = 0x400, scoped, tag = 'output window, operand 0, single buffered']
    %7 = vsyncpa [#allocation3], 0
    %8 = vsyncpa [#allocation6], 0
    %9 = vsyncpa [#allocation4], 0
    // Predicated region
    $region2: #{tpu_custom_call.1} parent=1 // pred_check
      _
    $region3: #{tpu_custom_call.1} parent=1 // pred_check_branch
      %11 = sbr.rel (0) target = $region5
    $region4: #{tpu_custom_call.1} parent=1 // pred_region
      %13 = vsyncadd [#allocation3], 0
      %s15 = sshll.u32 %s0, 4
      %s16 = int_to_ptr.hbm [resolvable:$true] %s15
      %s17 = sshll.u32 [#allocation2], 4
      %s18 = int_to_ptr.vmem [resolvable:$true] %s17
      %20 = dma.hbm_to_vmem [thread:$0]  %s16, 64, %s18, [#allocation3]
    $region5: #{tpu_custom_call.1} parent=1 // pred_fallthru
      _
    // Predicated region
    $region6: #{tpu_custom_call.1} parent=1 // pred_check
      _
    $region7: #{tpu_custom_call.1} parent=1 // pred_check_branch
      %22 = sbr.rel (0) target = $region9
    $region8: #{tpu_custom_call.1} parent=1 // pred_region
      %24 = vsyncadd [#allocation6], 0
      %s25 = sshll.u32 %s1, 4
      %s26 = int_to_ptr.hbm [resolvable:$true] %s25
      %s27 = sshll.u32 [#allocation5], 4
      %s28 = int_to_ptr.vmem [resolvable:$true] %s27
      %33 = dma.hbm_to_vmem [thread:$0]  %s26, 256, %s28, [#allocation6], 128, 128, 8
    $region9: #{tpu_custom_call.1} parent=1 // pred_fallthru
      _
    // Predicated region
    $region10: #{tpu_custom_call.1} parent=1 // pred_check
      _
    $region11: #{tpu_custom_call.1} parent=1 // pred_check_branch
      %35 = sbr.rel (0) target = $region13
    $region12: #{tpu_custom_call.1} parent=1 // pred_region
      %37 = dma.done [#allocation3], 64
    $region13: #{tpu_custom_call.1} parent=1 // pred_fallthru
      _
    // Predicated region
    $region14: #{tpu_custom_call.1} parent=1 // pred_check
      _
    $region15: #{tpu_custom_call.1} parent=1 // pred_check_branch
      %39 = sbr.rel (0) target = $region17
    $region16: #{tpu_custom_call.1} parent=1 // pred_region
      %41 = dma.done [#allocation6], 256
    $region17: #{tpu_custom_call.1} parent=1 // pred_fallthru
      _
    %v42 = vld [vmem:[#allocation5] sm:$0xf]
    %v43 = vld [vmem:[#allocation5 + $0x4] sm:$0x1]
    %v44 = vld [vmem:[#allocation5 + $0x5] sm:$0x1]
    %v45 = vld [vmem:[#allocation5 + $0x9] sm:$0x1]
    %v46 = vperm.slane %v44, 0
    %v47 = vmul.f32 %v42, %v46
    %vm48 = vcmask 158720
    %v49 = vsel %vm48, %v47, 0.0
    %50 = vadd.xlane.f32.xlu0 %v49
    %v51 = vpop.xlane.xlu0 %50
    %v52 = vmul.f32 %v43, %v44
    %vm53 = vcmask 155648
    %v54 = vsel %vm53, %v52, 0.0
    %55 = vadd.xlane.f32.xlu0 %v54
    %v56 = vpop.xlane.xlu0 %55
    %v57 = vadd.f32 %v56, %v45
    %v58 = vld [vmem:[#allocation2] sm:$0xf]
    %v59 = vmul.f32 %v58, %v51
    %vm60 = vcmask 27648
    %v61 = vsel %vm60, %v59, 0.0
    %v62 = vrot.slane %v61, 4
    %v63 = vadd.f32 %v61, %v62
    %v64 = vrot.slane %v63, 2
    %v65 = vadd.f32 %v63, %v64
    %v66 = vrot.slane %v65, 1
    %v67 = vadd.f32 %v65, %v66
    %vm68 = vcmask 31744
    %v69 = vsel %vm68, %v67, -inf
    %70 = vmax.xlane.f32.xlu0 %v69
    %v71 = vpop.xlane.xlu0 %70
    %v72 = vadd.f32 %v71, %v57
    %v73 = vmax.f32 %v72, 0.0
    %75 = vset.pattern.permute.xlu0 0
    %76 = vperm.xlu0 %75, %v73
    %v77 = vpop.permute.xlu0 %76
    %vm79 = vcmask 24576
    %80 = vst.msk [vmem:[#allocation7] sm:$0x1] %vm79, %v77
    // Predicated region
    $region18: #{tpu_custom_call.1} parent=1 // pred_check
      _
    $region19: #{tpu_custom_call.1} parent=1 // pred_check_branch
      %82 = sbr.rel (0) target = $region21
    $region20: #{tpu_custom_call.1} parent=1 // pred_region
      %84 = vsyncadd [#allocation4], 0
      %s86 = sshll.u32 [#allocation7], 4
      %s87 = int_to_ptr.vmem [resolvable:$true] %s86
      %s88 = sshll.u32 %s2, 4
      %s89 = int_to_ptr.hbm [resolvable:$true] %s88
      %91 = dma.vmem_to_hbm [thread:$0]  %s87, 16, %s89, [#allocation4]
    $region21: #{tpu_custom_call.1} parent=1 // pred_fallthru
      _
    // Predicated region
    $region22: #{tpu_custom_call.1} parent=1 // pred_check
      _
    $region23: #{tpu_custom_call.1} parent=1 // pred_check_branch
      %93 = sbr.rel (0) target = $region25
    $region24: #{tpu_custom_call.1} parent=1 // pred_region
      %95 = dma.done [#allocation4], 16
    $region25: #{tpu_custom_call.1} parent=1 // pred_fallthru
      _
    %96 = vsyncpa [#allocation3], 1
    %97 = vsyncpa [#allocation6], 1
    %98 = vsyncpa [#allocation4], 1

</llo_original>
